<compile_context>
chip_gen: v5e
topology: v5e:2x2
jax: 0.10.0
libtpu: 0.0.40
codegen_flags: <defaults>
</compile_context>

<pallas_src>
import functools
import math

import jax
import jax.numpy as jnp
from jax.experimental import pallas as pl
from jax.experimental.pallas import tpu as pltpu


def _round_up(x, m):
    return ((x + m - 1) // m) * m


def simple_dnn_kernel(xt_ref, w1t_ref, b1_ref, w2t_ref, b2_ref, ot_ref, *, chunk):
    # Transposed layout: batch lives on the lane (last) axis.
    #   xt_ref : (20, TILE_B)  storage dtype (f32 default, optionally bf16)
    #   w1t_ref: (64, 20)      storage dtype  (constant index_map -> VMEM-resident)
    #   b1_ref : (64, 1)       f32
    #   w2t_ref: (2, 64)       storage dtype
    #   b2_ref : (2, 1)        f32
    #   ot_ref : (2, TILE_B)   f32  (lane-dense, no sublane padding written back)
    w1t = w1t_ref[...].astype(jnp.float32)
    w2t = w2t_ref[...].astype(jnp.float32)
    b1 = b1_ref[...]
    b2 = b2_ref[...]
    n_chunks = xt_ref.shape[1] // chunk
    # Static loop over lane chunks: keeps the (64, chunk) f32 hidden activation
    # small regardless of how big the streamed DMA tile is.
    for c in range(n_chunks):
        lo = c * chunk
        x_c = xt_ref[:, lo:lo + chunk].astype(jnp.float32)          # (20, chunk)
        h = jnp.dot(w1t, x_c, preferred_element_type=jnp.float32)   # (64, chunk)
        h = jnp.maximum(h + b1, 0.0)                                # ReLU, f32 VPU
        y = jnp.dot(w2t, h, preferred_element_type=jnp.float32)     # (2, chunk)
        ot_ref[:, lo:lo + chunk] = (y + b2).astype(ot_ref.dtype)


@functools.partial(jax.jit, static_argnames=("tile_b", "chunk_b", "compute_dtype"))
def simple_dnn(x, w1, b1, w2, b2, *, tile_b=16384, chunk_b=2048,
               compute_dtype=jnp.float32):
    """Forward pass of SimpleDNN.

    x : (B, 20) f32 (same layout as the PyTorch module input)
    w1: (20, 64), b1: (64,)   first Linear, stored [in, out]
    w2: (64, 2),  b2: (2,)    second Linear
    Returns (B, 2) in x.dtype.
    """
    B, in_f = x.shape
    hidden = w1.shape[1]
    out_f = w2.shape[1]

    # Batch tile: multiple of 256 (lane-aligned), capped for tiny batches.
    tile = min(tile_b, _round_up(B, 256))
    n_tiles = pl.cdiv(B, tile)
    b_pad = n_tiles * tile

    # In-kernel lane chunk: must divide the tile; both are multiples of 256 so
    # the gcd fallback stays lane-aligned.
    chunk = min(chunk_b, tile)
    if tile % chunk != 0:
        chunk = math.gcd(tile, chunk)

    # Wrapper-side layout plumbing: pad batch, put batch on the lane dim, cast.
    xt = x
    if b_pad != B:
        xt = jnp.pad(xt, ((0, b_pad - B), (0, 0)))
    xt = xt.T.astype(compute_dtype)                       # (20, b_pad)
    w1t = w1.T.astype(compute_dtype)                      # (64, 20)
    w2t = w2.T.astype(compute_dtype)                      # (2, 64)
    b1c = b1.reshape(hidden, 1).astype(jnp.float32)       # (64, 1)
    b2c = b2.reshape(out_f, 1).astype(jnp.float32)        # (2, 1)

    # Cost estimate: account for VMEM sublane padding of the streamed input.
    itemsize = jnp.dtype(compute_dtype).itemsize
    sub = {1: 32, 2: 16, 4: 8}[itemsize]
    in_rows_p = _round_up(in_f, sub)
    flops = 2 * b_pad * (in_f * hidden + hidden * out_f)
    bytes_accessed = (in_rows_p * b_pad * itemsize          # streamed x tiles
                      + w1t.size * itemsize + w2t.size * itemsize
                      + b1c.size * 4 + b2c.size * 4
                      + out_f * b_pad * 4)                  # lane-dense output

    out_t = pl.pallas_call(
        functools.partial(simple_dnn_kernel, chunk=chunk),
        out_shape=jax.ShapeDtypeStruct((out_f, b_pad), jnp.float32),
        grid=(n_tiles,),
        in_specs=[
            # Activations: streamed, double-buffered by the Pallas pipeline.
            pl.BlockSpec((in_f, tile), lambda i: (0, i)),
            # Weights / biases: constant index_map -> DMA'd once, VMEM-resident.
            pl.BlockSpec((hidden, in_f), lambda i: (0, 0)),
            pl.BlockSpec((hidden, 1), lambda i: (0, 0)),
            pl.BlockSpec((out_f, hidden), lambda i: (0, 0)),
            pl.BlockSpec((out_f, 1), lambda i: (0, 0)),
        ],
        out_specs=pl.BlockSpec((out_f, tile), lambda i: (0, i)),
        compiler_params=pltpu.CompilerParams(
            # Independent batch tiles -> eligible for multi-TensorCore sharding.
            dimension_semantics=("parallel",),
            # Headroom for large tiles; stays below v7x's 64 MiB physical VMEM.
            vmem_limit_bytes=48 * 1024 * 1024,
        ),
        cost_estimate=pl.CostEstimate(
            flops=flops, transcendentals=0, bytes_accessed=bytes_accessed),
    )(xt, w1t, b1c, w2t, b2c)

    # Drop batch padding, back to (B, 2).
    return out_t[:, :B].T.astype(x.dtype)


def init_params(key):
    """Deterministic init matching nn.Linear shapes: (20->64), (64->2)."""
    k1, k2, k3, k4 = jax.random.split(key, 4)
    bound1 = 1.0 / jnp.sqrt(20.0)
    bound2 = 1.0 / jnp.sqrt(64.0)
    w1 = jax.random.uniform(k1, (20, 64), jnp.float32, -bound1, bound1)
    b1 = jax.random.uniform(k2, (64,), jnp.float32, -bound1, bound1)
    w2 = jax.random.uniform(k3, (64, 2), jnp.float32, -bound2, bound2)
    b2 = jax.random.uniform(k4, (2,), jnp.float32, -bound2, bound2)
    return w1, b1, w2, b2


if __name__ == "__main__":
    key = jax.random.PRNGKey(0)
    kx, kp = jax.random.split(key)

    B = 8
    x = jax.random.normal(kx, (B, 20), jnp.float32)
    w1, b1, w2, b2 = init_params(kp)

    # Plain-JAX f32 reference.
    ref = jnp.maximum(x @ w1 + b1, 0.0) @ w2 + b2

    out = simple_dnn(x, w1, b1, w2, b2)
    jax.block_until_ready(out)
    assert out.shape == (B, 2)
    assert jnp.allclose(out, ref, atol=1e-4, rtol=1e-4)

    print("KERNEL_OK")
</pallas_src>

<mosaic_0001>
module attributes {stable_mosaic.version = 11 : i64} {
  func.func @simple_dnn_kernel(%arg0: i32, %arg1: memref<20x256xf32, #tpu.memory_space<vmem>>, %arg2: memref<64x20xf32, #tpu.memory_space<vmem>>, %arg3: memref<64x1xf32, #tpu.memory_space<vmem>>, %arg4: memref<2x64xf32, #tpu.memory_space<vmem>>, %arg5: memref<2x1xf32, #tpu.memory_space<vmem>>, %arg6: memref<2x256xf32, #tpu.memory_space<vmem>>) attributes {dimension_semantics = [#tpu.dimension_semantics<parallel>], iteration_bounds = array<i64: 1>, scalar_prefetch = 0 : i64, scratch_operands = 0 : i64, tpu.core_type = #tpu.core_type<tc>, window_params = [{transform_indices = @transform_0, window_bounds = array<i64: 20, 256>}, {pipeline_mode = #tpu.pipeline_mode<synchronous>, transform_indices = @transform_1, window_bounds = array<i64: 64, 20>}, {pipeline_mode = #tpu.pipeline_mode<synchronous>, transform_indices = @transform_2, window_bounds = array<i64: 64, 1>}, {pipeline_mode = #tpu.pipeline_mode<synchronous>, transform_indices = @transform_3, window_bounds = array<i64: 2, 64>}, {pipeline_mode = #tpu.pipeline_mode<synchronous>, transform_indices = @transform_4, window_bounds = array<i64: 2, 1>}, {transform_indices = @transform_5, window_bounds = array<i64: 2, 256>}]} {
    %c0 = arith.constant 0 : index
    %c0_0 = arith.constant 0 : index
    %0 = vector.load %arg2[%c0, %c0_0] : memref<64x20xf32, #tpu.memory_space<vmem>>, vector<64x20xf32>
    %c0_1 = arith.constant 0 : index
    %c0_2 = arith.constant 0 : index
    %1 = vector.load %arg4[%c0_1, %c0_2] : memref<2x64xf32, #tpu.memory_space<vmem>>, vector<2x64xf32>
    %c0_3 = arith.constant 0 : index
    %c0_4 = arith.constant 0 : index
    %2 = vector.load %arg3[%c0_3, %c0_4] : memref<64x1xf32, #tpu.memory_space<vmem>>, vector<64x1xf32>
    %c0_5 = arith.constant 0 : index
    %c0_6 = arith.constant 0 : index
    %3 = vector.load %arg5[%c0_5, %c0_6] : memref<2x1xf32, #tpu.memory_space<vmem>>, vector<2x1xf32>
    %c0_7 = arith.constant 0 : index
    %c0_8 = arith.constant 0 : index
    %4 = vector.load %arg1[%c0_7, %c0_8] : memref<20x256xf32, #tpu.memory_space<vmem>>, vector<20x256xf32>
    %cst = arith.constant dense<0.000000e+00> : vector<64x256xf32>
    %5 = tpu.matmul %0, %4, %cst {dimension_numbers = #tpu.dot_dimension_numbers<[1], [0], [0], [1], [0, 0, 1, 1], [], []>} : vector<64x20xf32>, vector<20x256xf32>, vector<64x256xf32> -> vector<64x256xf32>
    %6 = vector.broadcast %2 : vector<64x1xf32> to vector<64x256xf32>
    %7 = arith.addf %5, %6 : vector<64x256xf32>
    %cst_9 = arith.constant 0.000000e+00 : f32
    %8 = vector.broadcast %cst_9 : f32 to vector<64x256xf32>
    %9 = arith.maximumf %7, %8 : vector<64x256xf32>
    %cst_10 = arith.constant dense<0.000000e+00> : vector<2x256xf32>
    %10 = tpu.matmul %1, %9, %cst_10 {dimension_numbers = #tpu.dot_dimension_numbers<[1], [0], [0], [1], [0, 0, 1, 1], [], []>} : vector<2x64xf32>, vector<64x256xf32>, vector<2x256xf32> -> vector<2x256xf32>
    %11 = vector.broadcast %3 : vector<2x1xf32> to vector<2x256xf32>
    %12 = arith.addf %10, %11 : vector<2x256xf32>
    %c0_11 = arith.constant 0 : index
    %c0_12 = arith.constant 0 : index
    %13 = vector.load %arg6[%c0_11, %c0_12] : memref<2x256xf32, #tpu.memory_space<vmem>>, vector<2x256xf32>
    tpu.vector_store %arg6[%c0_11, %c0_12], %12 {strides = array<i32>} : memref<2x256xf32, #tpu.memory_space<vmem>>, vector<2x256xf32>,
    return
  }
  func.func @transform_0(%arg0: i32) -> (i32, i32) {
    %c0_i32 = arith.constant 0 : i32
    %c0_i32_0 = arith.constant 0 : i32
    return %c0_i32, %arg0 : i32, i32
  }
  func.func @transform_1(%arg0: i32) -> (i32, i32) {
    %c0_i32 = arith.constant 0 : i32
    %c0_i32_0 = arith.constant 0 : i32
    %c0_i32_1 = arith.constant 0 : i32
    return %c0_i32, %c0_i32_0 : i32, i32
  }
  func.func @transform_2(%arg0: i32) -> (i32, i32) {
    %c0_i32 = arith.constant 0 : i32
    %c0_i32_0 = arith.constant 0 : i32
    %c0_i32_1 = arith.constant 0 : i32
    return %c0_i32, %c0_i32_0 : i32, i32
  }
  func.func @transform_3(%arg0: i32) -> (i32, i32) {
    %c0_i32 = arith.constant 0 : i32
    %c0_i32_0 = arith.constant 0 : i32
    %c0_i32_1 = arith.constant 0 : i32
    return %c0_i32, %c0_i32_0 : i32, i32
  }
  func.func @transform_4(%arg0: i32) -> (i32, i32) {
    %c0_i32 = arith.constant 0 : i32
    %c0_i32_0 = arith.constant 0 : i32
    %c0_i32_1 = arith.constant 0 : i32
    return %c0_i32, %c0_i32_0 : i32, i32
  }
  func.func @transform_5(%arg0: i32) -> (i32, i32) {
    %c0_i32 = arith.constant 0 : i32
    %c0_i32_0 = arith.constant 0 : i32
    return %c0_i32, %arg0 : i32, i32
  }
}

</mosaic_0001>

<llo_original>
// kernel: simple_dnn.1
$region0: #{simple_dnn.1}
  #allocation0 [shape = 'u32[]', space=smem, size = 0x4, offset = 0x4, fixed_abs, tag = 'smem constant byte address 0x4 - core index']
  #allocation1 [shape = 'u32[72,128]{1,0:T(1,128)}', space=vmem, size = 0x9000, scoped, tag = 'internal scratch']
  %s0 = inlined_call_operand.vmem [shape: f32[20,256], index: 0, kind: input, shape index: {}]
  %s1 = inlined_call_operand.vmem [shape: f32[64,20], index: 1, kind: input, shape index: {}]
  %s2 = inlined_call_operand.vmem [shape: f32[64,1], index: 2, kind: input, shape index: {}]
  %s3 = inlined_call_operand.vmem [shape: f32[2,64], index: 3, kind: input, shape index: {}]
  %s4 = inlined_call_operand.vmem [shape: f32[2,1], index: 4, kind: input, shape index: {}]
  %s5 = inlined_call_operand.vmem [shape: f32[2,256], index: 5, kind: output, shape index: {}]
  %s6 = sld [smem:[#allocation0]]
  $region30: #{simple_dnn.1} parent=0
    _
  %s8 = ssub.s32 1, %s6
  %s9 = scalar_select 0, %s8, %s6
  // Predicated region
  $region2: #{simple_dnn.1} parent=0 // pred_check
    _
  $region3: #{simple_dnn.1} parent=0 // pred_check_branch
    %11 = sbr.rel (0) target = $region5
  $region4: #{simple_dnn.1} parent=0 // pred_region
    _
  $region5: #{simple_dnn.1} parent=0 // pred_fallthru
    _
  // Predicated region
  $region6: #{simple_dnn.1} parent=0 // pred_check
    _
  $region7: #{simple_dnn.1} parent=0 // pred_check_branch
    %13 = sbr.rel (0) target = $region9
  $region8: #{simple_dnn.1} parent=0 // pred_region
    _
  $region9: #{simple_dnn.1} parent=0 // pred_fallthru
    _
  // Predicated region
  $region10: #{simple_dnn.1} parent=0 // pred_check
    _
  $region11: #{simple_dnn.1} parent=0 // pred_check_branch
    %15 = sbr.rel (0) target = $region13
  $region12: #{simple_dnn.1} parent=0 // pred_region
    _
  $region13: #{simple_dnn.1} parent=0 // pred_fallthru
    _
  // Predicated region
  $region14: #{simple_dnn.1} parent=0 // pred_check
    _
  $region15: #{simple_dnn.1} parent=0 // pred_check_branch
    %17 = sbr.rel (0) target = $region17
  $region16: #{simple_dnn.1} parent=0 // pred_region
    _
  $region17: #{simple_dnn.1} parent=0 // pred_fallthru
    _
  // Predicated region
  $region18: #{simple_dnn.1} parent=0 // pred_check
    _
  $region19: #{simple_dnn.1} parent=0 // pred_check_branch
    %19 = sbr.rel (0) target = $region21
  $region20: #{simple_dnn.1} parent=0 // pred_region
    _
  $region21: #{simple_dnn.1} parent=0 // pred_fallthru
    _
  %v20 = vld [vmem:[%s1] sm:$0xff]
  %v21 = vld [vmem:[%s1 + $0x8] sm:$0xff]
  %v22 = vld [vmem:[%s1 + $0x10] sm:$0xff]
  %v23 = vld [vmem:[%s1 + $0x18] sm:$0xff]
  %v24 = vld [vmem:[%s1 + $0x20] sm:$0xff]
  %v25 = vld [vmem:[%s1 + $0x28] sm:$0xff]
  %v26 = vld [vmem:[%s1 + $0x30] sm:$0xff]
  %v27 = vld [vmem:[%s1 + $0x38] sm:$0xff]
  %v28 = vld [vmem:[%s3] sm:$0x3]
  %v29 = vld [vmem:[%s2] sm:$0xff]
  %v30 = vld [vmem:[%s2 + $0x8] sm:$0xff]
  %v31 = vld [vmem:[%s2 + $0x10] sm:$0xff]
  %v32 = vld [vmem:[%s2 + $0x18] sm:$0xff]
  %v33 = vld [vmem:[%s2 + $0x20] sm:$0xff]
  %v34 = vld [vmem:[%s2 + $0x28] sm:$0xff]
  %v35 = vld [vmem:[%s2 + $0x30] sm:$0xff]
  %v36 = vld [vmem:[%s2 + $0x38] sm:$0xff]
  %v37 = vld [vmem:[%s4] sm:$0x3]
  %v38 = vld [vmem:[%s0] sm:$0xff]
  %v39 = vld [vmem:[%s0 + $0x8] sm:$0xff]
  %v40 = vld [vmem:[%s0 + $0x10] sm:$0xff]
  %v41 = vld [vmem:[%s0 + $0x18] sm:$0xff]
  %v42 = vld [vmem:[%s0 + $0x20] sm:$0xf]
  %v43 = vld [vmem:[%s0 + $0x28] sm:$0xf]
  %45 = vset.pattern.permute.xlu0 0
  %46 = vperm.xlu0 %45, %v29
  %v47 = vpop.permute.xlu0 %46
  %50 = vset.pattern.permute.xlu0 0
  %51 = vperm.xlu0 %50, %v30
  %v52 = vpop.permute.xlu0 %51
  %55 = vset.pattern.permute.xlu0 0
  %56 = vperm.xlu0 %55, %v31
  %v57 = vpop.permute.xlu0 %56
  %60 = vset.pattern.permute.xlu0 0
  %61 = vperm.xlu0 %60, %v32
  %v62 = vpop.permute.xlu0 %61
  %65 = vset.pattern.permute.xlu0 0
  %66 = vperm.xlu0 %65, %v33
  %v67 = vpop.permute.xlu0 %66
  %70 = vset.pattern.permute.xlu0 0
  %71 = vperm.xlu0 %70, %v34
  %v72 = vpop.permute.xlu0 %71
  %75 = vset.pattern.permute.xlu0 0
  %76 = vperm.xlu0 %75, %v35
  %v77 = vpop.permute.xlu0 %76
  %80 = vset.pattern.permute.xlu0 0
  %81 = vperm.xlu0 %80, %v36
  %v82 = vpop.permute.xlu0 %81
  %vm84 = vcmask 162816
  %v86 = vsel %vm84, %v20, 0
  %v89 = vsel %vm84, %v21, 0
  %v92 = vsel %vm84, %v22, 0
  %v95 = vsel %vm84, %v23, 0
  %v98 = vsel %vm84, %v24, 0
  %v101 = vsel %vm84, %v25, 0
  %v104 = vsel %vm84, %v26, 0
  %v107 = vsel %vm84, %v27, 0
  %vm109 = vcmask 1043456
  %v111 = vsel %vm109, %v42, 0
  %v114 = vsel %vm109, %v43, 0
  %116 = vmatpush.msra.mxu0 0.0
  %117 = vmatpush.msra.mxu0 0.0
  %118 = vmatpush.msra.mxu0 0.0
  %119 = vmatpush.msra.mxu0 0.0
  %120 = vmatpush.msra.mxu0 0.0
  %121 = vmatpush.msra.mxu0 0.0
  %122 = vmatpush.msra.mxu0 0.0
  %123 = vmatpush.msra.mxu0 0.0
  %124 = vmatpush.msra.mxu0 0.0
  %125 = vmatpush.msra.mxu0 0.0
  %126 = vmatpush.msra.mxu0 0.0
  %127 = vmatpush.msra.mxu0 0.0
  %128 = vmatpush.msra.mxu0 0.0
  %129 = vmatpush.msra.mxu0 %v111
  %130 = vmatpush.msra.mxu0 %v40
  %131 = vmatpush.msra.mxu0 %v38
  %132 = vmatmul.f32.gmra.mxu0 %v86
  %v133 = vpop.f32.mrf.mxu0
  %v134 = vadd.f32 %v47, %v133
  %135 = vmatmul.f32.gmra.mxu0 %v89
  %v136 = vpop.f32.mrf.mxu0
  %v137 = vadd.f32 %v52, %v136
  %138 = vmatmul.f32.gmra.mxu0 %v92
  %v139 = vpop.f32.mrf.mxu0
  %v140 = vadd.f32 %v57, %v139
  %141 = vmatmul.f32.gmra.mxu0 %v95
  %v142 = vpop.f32.mrf.mxu0
  %v143 = vadd.f32 %v62, %v142
  %144 = vmatmul.f32.gmra.mxu0 %v98
  %v145 = vpop.f32.mrf.mxu0
  %v146 = vadd.f32 %v67, %v145
  %147 = vmatmul.f32.gmra.mxu0 %v101
  %v148 = vpop.f32.mrf.mxu0
  %v149 = vadd.f32 %v72, %v148
  %150 = vmatmul.f32.gmra.mxu0 %v104
  %v151 = vpop.f32.mrf.mxu0
  %v152 = vadd.f32 %v77, %v151
  %153 = vmatmul.f32.gmra.mxu0 %v107
  %v154 = vpop.f32.mrf.mxu0
  %v155 = vadd.f32 %v82, %v154
  %156 = vdwg.mxu0
  %157 = vmatpush.msra.mxu0 0.0
  %158 = vmatpush.msra.mxu0 0.0
  %159 = vmatpush.msra.mxu0 0.0
  %160 = vmatpush.msra.mxu0 0.0
  %161 = vmatpush.msra.mxu0 0.0
  %162 = vmatpush.msra.mxu0 0.0
  %163 = vmatpush.msra.mxu0 0.0
  %164 = vmatpush.msra.mxu0 0.0
  %165 = vmatpush.msra.mxu0 0.0
  %166 = vmatpush.msra.mxu0 0.0
  %167 = vmatpush.msra.mxu0 0.0
  %168 = vmatpush.msra.mxu0 0.0
  %169 = vmatpush.msra.mxu0 0.0
  %170 = vmatpush.msra.mxu0 %v114
  %171 = vmatpush.msra.mxu0 %v41
  %172 = vmatpush.msra.mxu0 %v39
  %173 = vmatmul.f32.gmra.mxu0 %v86
  %v174 = vpop.f32.mrf.mxu0
  %v175 = vadd.f32 %v47, %v174
  %176 = vmatmul.f32.gmra.mxu0 %v89
  %v177 = vpop.f32.mrf.mxu0
  %v178 = vadd.f32 %v52, %v177
  %179 = vmatmul.f32.gmra.mxu0 %v92
  %v180 = vpop.f32.mrf.mxu0
  %v181 = vadd.f32 %v57, %v180
  %182 = vmatmul.f32.gmra.mxu0 %v95
  %v183 = vpop.f32.mrf.mxu0
  %v184 = vadd.f32 %v62, %v183
  %185 = vmatmul.f32.gmra.mxu0 %v98
  %v186 = vpop.f32.mrf.mxu0
  %v187 = vadd.f32 %v67, %v186
  %188 = vmatmul.f32.gmra.mxu0 %v101
  %v189 = vpop.f32.mrf.mxu0
  %v190 = vadd.f32 %v72, %v189
  %191 = vmatmul.f32.gmra.mxu0 %v104
  %v192 = vpop.f32.mrf.mxu0
  %v193 = vadd.f32 %v77, %v192
  %194 = vmatmul.f32.gmra.mxu0 %v107
  %v195 = vpop.f32.mrf.mxu0
  %v196 = vadd.f32 %v82, %v195
  %197 = vdwg.mxu0
  %v198 = vmax.f32 %v134, 0.0
  %v199 = vmax.f32 %v175, 0.0
  %v200 = vmax.f32 %v137, 0.0
  %v201 = vmax.f32 %v178, 0.0
  %v202 = vmax.f32 %v140, 0.0
  %v203 = vmax.f32 %v181, 0.0
  %v204 = vmax.f32 %v143, 0.0
  %v205 = vmax.f32 %v184, 0.0
  %v206 = vmax.f32 %v146, 0.0
  %v207 = vmax.f32 %v187, 0.0
  %v208 = vmax.f32 %v149, 0.0
  %v209 = vmax.f32 %v190, 0.0
  %v210 = vmax.f32 %v152, 0.0
  %v211 = vmax.f32 %v193, 0.0
  %v212 = vmax.f32 %v155, 0.0
  %v213 = vmax.f32 %v196, 0.0
  %215 = vset.pattern.permute.xlu0 0
  %216 = vperm.xlu0 %215, %v37
  %v217 = vpop.permute.xlu0 %216
  %vm219 = vcmask 523264
  %v221 = vsel %vm219, %v28, 0
  %223 = vmatpush.msra.mxu0 0.0
  %224 = vmatpush.msra.mxu0 0.0
  %225 = vmatpush.msra.mxu0 0.0
  %226 = vmatpush.msra.mxu0 0.0
  %227 = vmatpush.msra.mxu0 0.0
  %228 = vmatpush.msra.mxu0 0.0
  %229 = vmatpush.msra.mxu0 0.0
  %230 = vmatpush.msra.mxu0 0.0
  %231 = vmatpush.msra.mxu0 %v212
  %232 = vmatpush.msra.mxu0 %v210
  %233 = vmatpush.msra.mxu0 %v208
  %234 = vmatpush.msra.mxu0 %v206
  %235 = vmatpush.msra.mxu0 %v204
  %236 = vmatpush.msra.mxu0 %v202
  %237 = vmatpush.msra.mxu0 %v200
  %238 = vmatpush.msra.mxu0 %v198
  %239 = vmatmul.f32.gmra.mxu0 %v221
  %v240 = vpop.f32.mrf.mxu0
  %v241 = vadd.f32 %v217, %v240
  %242 = vdwg.mxu0
  %243 = vmatpush.msra.mxu0 0.0
  %244 = vmatpush.msra.mxu0 0.0
  %245 = vmatpush.msra.mxu0 0.0
  %246 = vmatpush.msra.mxu0 0.0
  %247 = vmatpush.msra.mxu0 0.0
  %248 = vmatpush.msra.mxu0 0.0
  %249 = vmatpush.msra.mxu0 0.0
  %250 = vmatpush.msra.mxu0 0.0
  %251 = vmatpush.msra.mxu0 %v213
  %252 = vmatpush.msra.mxu0 %v211
  %253 = vmatpush.msra.mxu0 %v209
  %254 = vmatpush.msra.mxu0 %v207
  %255 = vmatpush.msra.mxu0 %v205
  %256 = vmatpush.msra.mxu0 %v203
  %257 = vmatpush.msra.mxu0 %v201
  %258 = vmatpush.msra.mxu0 %v199
  %259 = vmatmul.f32.gmra.mxu0 %v221
  %v260 = vpop.f32.mrf.mxu0
  %v261 = vadd.f32 %v217, %v260
  %262 = vdwg.mxu0
  %v265 = vrot.slane %v261, 6
  %vm266 = vcmask 1041408
  %v267 = vsel %vm266, %v241, %v265
  %269 = vst [vmem:[%s5] sm:$0xf] %v267
  // Predicated region
  $region22: #{simple_dnn.1} parent=0 // pred_check
    _
  $region23: #{simple_dnn.1} parent=0 // pred_check_branch
    %271 = sbr.rel (0) target = $region25
  $region24: #{simple_dnn.1} parent=0 // pred_region
    _
  $region25: #{simple_dnn.1} parent=0 // pred_fallthru
    _
  // Predicated region
  $region26: #{simple_dnn.1} parent=0 // pred_check
    _
  $region27: #{simple_dnn.1} parent=0 // pred_check_branch
    %273 = sbr.rel (0) target = $region29
  $region28: #{simple_dnn.1} parent=0 // pred_region
    _
  $region29: #{simple_dnn.1} parent=0 // pred_fallthru
    _

</llo_original>
